<compile_context>
chip_gen: v5e
topology: v5e:2x2
jax: 0.10.0
libtpu: 0.0.40
codegen_flags: <defaults>
</compile_context>

<pallas_src>
import jax
import jax.numpy as jnp
from jax.experimental import pallas as pl
from jax.experimental.pallas import tpu as pltpu


def _mlp_kernel(x_ref, w1_ref, b1_ref, w2_ref, b2_ref, out_ref):
    # Two MXU matmuls (bf16 operands, f32 accumulation) + VPU bias/ReLU, fused.
    x = x_ref[...].astype(jnp.bfloat16)                     # (TB, I)
    w1 = w1_ref[...].astype(jnp.bfloat16)                   # (I, H)
    h = jnp.dot(x, w1, preferred_element_type=jnp.float32)  # (TB, H) f32
    h = jnp.maximum(h + b1_ref[...], 0.0)                   # bias + ReLU in f32
    w2 = w2_ref[...].astype(jnp.bfloat16)                   # (H, OP)
    y = jnp.dot(h.astype(jnp.bfloat16), w2,
                preferred_element_type=jnp.float32)         # (TB, OP) f32
    out_ref[...] = y + b2_ref[...]
    # TODO(synk): if this feeds RL action sampling, fuse softmax/log-prob here
    # (EUP/XLU are idle) — omitted to preserve the module's logits-only output.


def policy_gradient_net_forward(x, w1, b1, w2, b2, *, batch_tile=256):
    """Pallas forward of PolicyGradientNet.

    x:  (B, input_size)    float-ish (cast handled in-kernel)
    w1: (input_size, 128)  float32   (transposed vs. torch layout)
    b1: (128,)             float32
    w2: (128, output_size) float32   (transposed vs. torch layout)
    b2: (output_size,)     float32
    returns: (B, output_size) float32
    """
    x = jnp.asarray(x)
    B, I = x.shape
    H = w1.shape[1]
    O = w2.shape[1]

    # Lane-dense output: pad output features up to a multiple of 128 with zeros.
    OP = max(128, ((O + 127) // 128) * 128)
    if OP != O:
        w2p = jnp.pad(w2, ((0, 0), (0, OP - O)))
        b2p = jnp.pad(b2, (0, OP - O))
    else:
        w2p, b2p = w2, b2

    b1_2d = b1.reshape(1, H)
    b2_2d = b2p.reshape(1, OP)

    if B <= batch_tile:
        # Tiny batch: single block, no grid at all. Pad rows to a sublane
        # multiple (8) so the block is layout-friendly.
        BP = max(8, ((B + 7) // 8) * 8)
        xp = jnp.pad(x, ((0, BP - B), (0, 0))) if BP != B else x
        vmem = pl.BlockSpec(memory_space=pltpu.MemorySpace.VMEM)
        out = pl.pallas_call(
            _mlp_kernel,
            out_shape=jax.ShapeDtypeStruct((BP, OP), jnp.float32),
            in_specs=[vmem, vmem, vmem, vmem, vmem],
            out_specs=vmem,
        )(xp, w1, b1_2d, w2p, b2_2d)
    else:
        # Real rollout batch: tile the batch axis; weights stay resident
        # (constant block index), batch axis parallel across TensorCores.
        TB = batch_tile
        BP = ((B + TB - 1) // TB) * TB
        xp = jnp.pad(x, ((0, BP - B), (0, 0))) if BP != B else x
        out = pl.pallas_call(
            _mlp_kernel,
            out_shape=jax.ShapeDtypeStruct((BP, OP), jnp.float32),
            grid=(BP // TB,),
            in_specs=[
                pl.BlockSpec((TB, I), lambda b: (b, 0)),
                pl.BlockSpec((I, H), lambda b: (0, 0)),
                pl.BlockSpec((1, H), lambda b: (0, 0)),
                pl.BlockSpec((H, OP), lambda b: (0, 0)),
                pl.BlockSpec((1, OP), lambda b: (0, 0)),
            ],
            out_specs=pl.BlockSpec((TB, OP), lambda b: (b, 0)),
            compiler_params=pltpu.CompilerParams(
                dimension_semantics=("parallel",)
            ),
        )(xp, w1, b1_2d, w2p, b2_2d)

    return out[:B, :O]


def _init_params(key, input_size, hidden, output_size):
    """Deterministic init matching torch.nn.Linear's default (uniform +-1/sqrt(fan_in))."""
    k1, k2, k3, k4 = jax.random.split(key, 4)
    bound1 = 1.0 / jnp.sqrt(float(input_size))
    bound2 = 1.0 / jnp.sqrt(float(hidden))
    w1 = jax.random.uniform(k1, (input_size, hidden), jnp.float32, -bound1, bound1)
    b1 = jax.random.uniform(k2, (hidden,), jnp.float32, -bound1, bound1)
    w2 = jax.random.uniform(k3, (hidden, output_size), jnp.float32, -bound2, bound2)
    b2 = jax.random.uniform(k4, (output_size,), jnp.float32, -bound2, bound2)
    return w1, b1, w2, b2


def _ref_forward(x, w1, b1, w2, b2):
    # Pure-JAX f32 reference (same math as the PyTorch module).
    return jnp.maximum(x @ w1 + b1, 0.0) @ w2 + b2


if __name__ == "__main__":
    key = jax.random.PRNGKey(0)
    kx, kp, kx2 = jax.random.split(key, 3)

    input_size = 32      # e.g. observation dim
    hidden = 128         # fixed by the module
    output_size = 8      # e.g. number of actions
    w1, b1, w2, b2 = _init_params(kp, input_size, hidden, output_size)

    # --- small-batch (no-grid) path ---
    batch = 8
    x = jax.random.normal(kx, (batch, input_size), dtype=jnp.float32)
    out = jax.block_until_ready(policy_gradient_net_forward(x, w1, b1, w2, b2))
    ref = _ref_forward(x, w1, b1, w2, b2)
    assert out.shape == (batch, output_size)
    # bf16 MXU operands with f32 accumulation -> loose tolerance vs. f32 ref.
    assert jnp.allclose(out, ref, atol=3e-2, rtol=3e-2)

    # --- batch-tiled (grid) path ---
    big_batch = 512
    xb = jax.random.normal(kx2, (big_batch, input_size), dtype=jnp.float32)
    outb = jax.block_until_ready(policy_gradient_net_forward(xb, w1, b1, w2, b2))
    refb = _ref_forward(xb, w1, b1, w2, b2)
    assert outb.shape == (big_batch, output_size)
    assert jnp.allclose(outb, refb, atol=3e-2, rtol=3e-2)

    print("KERNEL_OK")
</pallas_src>

<mosaic_0001>
module attributes {stable_mosaic.version = 11 : i64} {
  func.func @_mlp_kernel(%arg0: memref<8x32xf32, #tpu.memory_space<vmem>>, %arg1: memref<32x128xf32, #tpu.memory_space<vmem>>, %arg2: memref<1x128xf32, #tpu.memory_space<vmem>>, %arg3: memref<128x128xf32, #tpu.memory_space<vmem>>, %arg4: memref<1x128xf32, #tpu.memory_space<vmem>>, %arg5: memref<8x128xf32, #tpu.memory_space<vmem>>) attributes {dimension_semantics = [], scalar_prefetch = 0 : i64, scratch_operands = 0 : i64, tpu.core_type = #tpu.core_type<tc>} {
    %c0 = arith.constant 0 : index
    %c0_0 = arith.constant 0 : index
    %0 = vector.load %arg0[%c0, %c0_0] : memref<8x32xf32, #tpu.memory_space<vmem>>, vector<8x32xf32>
    %1 = arith.truncf %0 : vector<8x32xf32> to vector<8x32xbf16>
    %c0_1 = arith.constant 0 : index
    %c0_2 = arith.constant 0 : index
    %2 = vector.load %arg1[%c0_1, %c0_2] : memref<32x128xf32, #tpu.memory_space<vmem>>, vector<32x128xf32>
    %3 = arith.truncf %2 : vector<32x128xf32> to vector<32x128xbf16>
    %cst = arith.constant dense<0.000000e+00> : vector<8x128xf32>
    %4 = tpu.matmul %1, %3, %cst {dimension_numbers = #tpu.dot_dimension_numbers<[1], [0], [0], [1], [0, 0, 1, 1], [], []>} : vector<8x32xbf16>, vector<32x128xbf16>, vector<8x128xf32> -> vector<8x128xf32>
    %c0_3 = arith.constant 0 : index
    %c0_4 = arith.constant 0 : index
    %5 = vector.load %arg2[%c0_3, %c0_4] : memref<1x128xf32, #tpu.memory_space<vmem>>, vector<1x128xf32>
    %6 = vector.broadcast %5 : vector<1x128xf32> to vector<8x128xf32>
    %7 = arith.addf %4, %6 : vector<8x128xf32>
    %cst_5 = arith.constant 0.000000e+00 : f32
    %8 = vector.broadcast %cst_5 : f32 to vector<8x128xf32>
    %9 = arith.maximumf %7, %8 : vector<8x128xf32>
    %c0_6 = arith.constant 0 : index
    %c0_7 = arith.constant 0 : index
    %10 = vector.load %arg3[%c0_6, %c0_7] : memref<128x128xf32, #tpu.memory_space<vmem>>, vector<128x128xf32>
    %11 = arith.truncf %10 : vector<128x128xf32> to vector<128x128xbf16>
    %12 = arith.truncf %9 : vector<8x128xf32> to vector<8x128xbf16>
    %cst_8 = arith.constant dense<0.000000e+00> : vector<8x128xf32>
    %13 = tpu.matmul %12, %11, %cst_8 {dimension_numbers = #tpu.dot_dimension_numbers<[1], [0], [0], [1], [0, 0, 1, 1], [], []>} : vector<8x128xbf16>, vector<128x128xbf16>, vector<8x128xf32> -> vector<8x128xf32>
    %c0_9 = arith.constant 0 : index
    %c0_10 = arith.constant 0 : index
    %14 = vector.load %arg4[%c0_9, %c0_10] : memref<1x128xf32, #tpu.memory_space<vmem>>, vector<1x128xf32>
    %15 = vector.broadcast %14 : vector<1x128xf32> to vector<8x128xf32>
    %16 = arith.addf %13, %15 : vector<8x128xf32>
    %c0_11 = arith.constant 0 : index
    %c0_12 = arith.constant 0 : index
    %17 = vector.load %arg5[%c0_11, %c0_12] : memref<8x128xf32, #tpu.memory_space<vmem>>, vector<8x128xf32>
    tpu.vector_store %arg5[%c0_11, %c0_12], %16 {strides = array<i32>} : memref<8x128xf32, #tpu.memory_space<vmem>>, vector<8x128xf32>,
    return
  }
}

</mosaic_0001>

<llo_original>
// kernel: tpu_custom_call.1
$region0: #{tpu_custom_call.1}
  #allocation0 [shape = 'u32[]', space=smem, size = 0x4, offset = 0x4, fixed_abs, tag = 'smem constant byte address 0x4 - core index']
  #allocation1 [shape = 'u32[72,128]{1,0:T(1,128)}', space=vmem, size = 0x9000, scoped, tag = 'internal scratch']
  %s0 = inlined_call_operand.hbm [shape: f32[8,32], index: 0, kind: input, shape index: {}]
  %s1 = inlined_call_operand.hbm [shape: f32[32,128], index: 1, kind: input, shape index: {}]
  %s2 = inlined_call_operand.vmem [shape: f32[1,128], index: 2, kind: input, shape index: {}]
  %s3 = inlined_call_operand.hbm [shape: f32[128,128], index: 3, kind: input, shape index: {}]
  %s4 = inlined_call_operand.vmem [shape: f32[1,128], index: 4, kind: input, shape index: {}]
  %s5 = inlined_call_operand.hbm [shape: f32[8,128], index: 5, kind: output, shape index: {}]
  %s6 = sld [smem:[#allocation0]]
  $region42: #{tpu_custom_call.1} parent=0
    _
  %s8 = ssub.s32 1, %s6
  %s9 = scalar_select 0, %s8, %s6
  $region1: #{tpu_custom_call.1} parent=0
    #allocation2 [shape = 'u8[4096]{0}', space=vmem, size = 0x1000, scoped, tag = 'input window, operand 0, single buffered']
    #allocation3 [shape = 's32[1]{0}', space=sflag, size = 0x4, scoped, tag = 'scoped memory for tpu_custom_call.1']
    #allocation4 [shape = 's32[1]{0}', space=sflag, size = 0x4, scoped, tag = 'scoped memory for tpu_custom_call.1']
    #allocation5 [shape = 'u8[16384]{0}', space=vmem, size = 0x4000, scoped, tag = 'input window, operand 1, single buffered']
    #allocation6 [shape = 's32[1]{0}', space=sflag, size = 0x4, scoped, tag = 'scoped memory for tpu_custom_call.1']
    #allocation7 [shape = 'u8[65536]{0}', space=vmem, size = 0x10000, scoped, tag = 'input window, operand 3, single buffered']
    #allocation8 [shape = 'u8[4096]{0}', space=vmem, size = 0x1000, scoped, tag = 'output window, operand 0, single buffered']
    %10 = vsyncpa [#allocation3], 0
    %11 = vsyncpa [#allocation6], 0
    %12 = vsyncpa [#allocation4], 0
    // Predicated region
    $region2: #{tpu_custom_call.1} parent=1 // pred_check
      _
    $region3: #{tpu_custom_call.1} parent=1 // pred_check_branch
      %14 = sbr.rel (0) target = $region5
    $region4: #{tpu_custom_call.1} parent=1 // pred_region
      %16 = vsyncadd [#allocation3], 0
      %s18 = sshll.u32 %s0, 4
      %s19 = int_to_ptr.hbm [resolvable:$true] %s18
      %s20 = sshll.u32 [#allocation2], 4
      %s21 = int_to_ptr.vmem [resolvable:$true] %s20
      %23 = dma.hbm_to_vmem [thread:$0]  %s19, 128, %s21, [#allocation3]
    $region5: #{tpu_custom_call.1} parent=1 // pred_fallthru
      _
    // Predicated region
    $region6: #{tpu_custom_call.1} parent=1 // pred_check
      _
    $region7: #{tpu_custom_call.1} parent=1 // pred_check_branch
      %25 = sbr.rel (0) target = $region9
    $region8: #{tpu_custom_call.1} parent=1 // pred_region
      %27 = vsyncadd [#allocation6], 0
      %s28 = sshll.u32 %s1, 4
      %s29 = int_to_ptr.hbm [resolvable:$true] %s28
      %s30 = sshll.u32 [#allocation5], 4
      %s31 = int_to_ptr.vmem [resolvable:$true] %s30
      %36 = dma.hbm_to_vmem [thread:$0]  %s29, 512, %s31, [#allocation6], 128, 128, 8
    $region9: #{tpu_custom_call.1} parent=1 // pred_fallthru
      _
    // Predicated region
    $region10: #{tpu_custom_call.1} parent=1 // pred_check
      _
    $region11: #{tpu_custom_call.1} parent=1 // pred_check_branch
      %38 = sbr.rel (0) target = $region13
    $region12: #{tpu_custom_call.1} parent=1 // pred_region
      _
    $region13: #{tpu_custom_call.1} parent=1 // pred_fallthru
      _
    // Predicated region
    $region14: #{tpu_custom_call.1} parent=1 // pred_check
      _
    $region15: #{tpu_custom_call.1} parent=1 // pred_check_branch
      %40 = sbr.rel (0) target = $region17
    $region16: #{tpu_custom_call.1} parent=1 // pred_region
      %42 = vsyncadd [#allocation6], 0
      %s43 = sshll.u32 %s3, 4
      %s44 = int_to_ptr.hbm [resolvable:$true] %s43
      %s45 = sshll.u32 [#allocation7], 4
      %s46 = int_to_ptr.vmem [resolvable:$true] %s45
      %51 = dma.hbm_to_vmem [thread:$0]  %s44, 2048, %s46, [#allocation6], 128, 128, 8
    $region17: #{tpu_custom_call.1} parent=1 // pred_fallthru
      _
    // Predicated region
    $region18: #{tpu_custom_call.1} parent=1 // pred_check
      _
    $region19: #{tpu_custom_call.1} parent=1 // pred_check_branch
      %53 = sbr.rel (0) target = $region21
    $region20: #{tpu_custom_call.1} parent=1 // pred_region
      _
    $region21: #{tpu_custom_call.1} parent=1 // pred_fallthru
      _
    // Predicated region
    $region22: #{tpu_custom_call.1} parent=1 // pred_check
      _
    $region23: #{tpu_custom_call.1} parent=1 // pred_check_branch
      %55 = sbr.rel (0) target = $region25
    $region24: #{tpu_custom_call.1} parent=1 // pred_region
      %57 = dma.done [#allocation3], 128
    $region25: #{tpu_custom_call.1} parent=1 // pred_fallthru
      _
    // Predicated region
    $region26: #{tpu_custom_call.1} parent=1 // pred_check
      _
    $region27: #{tpu_custom_call.1} parent=1 // pred_check_branch
      %59 = sbr.rel (0) target = $region29
    $region28: #{tpu_custom_call.1} parent=1 // pred_region
      %61 = dma.done [#allocation6], 512
    $region29: #{tpu_custom_call.1} parent=1 // pred_fallthru
      _
    // Predicated region
    $region30: #{tpu_custom_call.1} parent=1 // pred_check
      _
    $region31: #{tpu_custom_call.1} parent=1 // pred_check_branch
      %63 = sbr.rel (0) target = $region33
    $region32: #{tpu_custom_call.1} parent=1 // pred_region
      %65 = dma.done [#allocation6], 2048
    $region33: #{tpu_custom_call.1} parent=1 // pred_fallthru
      _
    %v67 = vld [vmem:[#allocation2] sm:$0xff]
    %v68 = vpack.c.bf16 %v67, %v67
    %v69 = vld [vmem:[#allocation5] sm:$0xff]
    %v70 = vld [vmem:[#allocation5 + $0x8] sm:$0xff]
    %v71 = vld [vmem:[#allocation5 + $0x10] sm:$0xff]
    %v72 = vld [vmem:[#allocation5 + $0x18] sm:$0xff]
    %v73 = vpack.c.bf16 %v70, %v69
    %v74 = vpack.c.bf16 %v72, %v71
    %v75 = vld [vmem:[%s2] sm:$0x1]
    %v77 = vperm.slane %v75, 0
    %vm79 = vcmask 261120
    %v81 = vsel %vm79, %v68, 0
    %83 = vmatpush.bf16.msra.mxu0 0
    %84 = vmatpush.bf16.msra.mxu0 0
    %85 = vmatpush.bf16.msra.mxu0 0
    %86 = vmatpush.bf16.msra.mxu0 0
    %87 = vmatpush.bf16.msra.mxu0 0
    %88 = vmatpush.bf16.msra.mxu0 0
    %89 = vmatpush.bf16.msra.mxu0 %v74
    %90 = vmatpush.bf16.msra.mxu0 %v73
    %91 = vmatmul.bf16.gmra.mxu0 %v81
    %v92 = vpop.f32.mrf.mxu0
    %v93 = vadd.f32 %v77, %v92
    %v94 = vpop.f32.mrf.mxu0
    %95 = vdwg.mxu0
    %v96 = vmax.f32 %v93, 0.0
    %v97 = vld [vmem:[#allocation7] sm:$0xff]
    %v98 = vld [vmem:[#allocation7 + $0x8] sm:$0xff]
    %v99 = vld [vmem:[#allocation7 + $0x10] sm:$0xff]
    %v100 = vld [vmem:[#allocation7 + $0x18] sm:$0xff]
    %v101 = vld [vmem:[#allocation7 + $0x20] sm:$0xff]
    %v102 = vld [vmem:[#allocation7 + $0x28] sm:$0xff]
    %v103 = vld [vmem:[#allocation7 + $0x30] sm:$0xff]
    %v104 = vld [vmem:[#allocation7 + $0x38] sm:$0xff]
    %v105 = vld [vmem:[#allocation7 + $0x40] sm:$0xff]
    %v106 = vld [vmem:[#allocation7 + $0x48] sm:$0xff]
    %v107 = vld [vmem:[#allocation7 + $0x50] sm:$0xff]
    %v108 = vld [vmem:[#allocation7 + $0x58] sm:$0xff]
    %v109 = vld [vmem:[#allocation7 + $0x60] sm:$0xff]
    %v110 = vld [vmem:[#allocation7 + $0x68] sm:$0xff]
    %v111 = vld [vmem:[#allocation7 + $0x70] sm:$0xff]
    %v112 = vld [vmem:[#allocation7 + $0x78] sm:$0xff]
    %v113 = vpack.c.bf16 %v98, %v97
    %v114 = vpack.c.bf16 %v100, %v99
    %v115 = vpack.c.bf16 %v102, %v101
    %v116 = vpack.c.bf16 %v104, %v103
    %v117 = vpack.c.bf16 %v106, %v105
    %v118 = vpack.c.bf16 %v108, %v107
    %v119 = vpack.c.bf16 %v110, %v109
    %v120 = vpack.c.bf16 %v112, %v111
    %v121 = vpack.c.bf16 %v96, %v96
    %v122 = vld [vmem:[%s4] sm:$0x1]
    %v124 = vperm.slane %v122, 0
    %126 = vmatpush.bf16.msra.mxu0 %v120
    %127 = vmatpush.bf16.msra.mxu0 %v119
    %128 = vmatpush.bf16.msra.mxu0 %v118
    %129 = vmatpush.bf16.msra.mxu0 %v117
    %130 = vmatpush.bf16.msra.mxu0 %v116
    %131 = vmatpush.bf16.msra.mxu0 %v115
    %132 = vmatpush.bf16.msra.mxu0 %v114
    %133 = vmatpush.bf16.msra.mxu0 %v113
    %134 = vmatmul.bf16.gmra.mxu0 %v121
    %v135 = vpop.f32.mrf.mxu0
    %v136 = vadd.f32 %v124, %v135
    %v137 = vpop.f32.mrf.mxu0
    %138 = vdwg.mxu0
    %139 = vst [vmem:[#allocation8] sm:$0xff] %v136
    // Predicated region
    $region34: #{tpu_custom_call.1} parent=1 // pred_check
      _
    $region35: #{tpu_custom_call.1} parent=1 // pred_check_branch
      %141 = sbr.rel (0) target = $region37
    $region36: #{tpu_custom_call.1} parent=1 // pred_region
      %143 = vsyncadd [#allocation4], 0
      %s145 = sshll.u32 [#allocation8], 4
      %s146 = int_to_ptr.vmem [resolvable:$true] %s145
      %s147 = sshll.u32 %s5, 4
      %s148 = int_to_ptr.hbm [resolvable:$true] %s147
      %150 = dma.vmem_to_hbm [thread:$0]  %s146, 128, %s148, [#allocation4]
    $region37: #{tpu_custom_call.1} parent=1 // pred_fallthru
      _
    // Predicated region
    $region38: #{tpu_custom_call.1} parent=1 // pred_check
      _
    $region39: #{tpu_custom_call.1} parent=1 // pred_check_branch
      %152 = sbr.rel (0) target = $region41
    $region40: #{tpu_custom_call.1} parent=1 // pred_region
      %154 = dma.done [#allocation4], 128
    $region41: #{tpu_custom_call.1} parent=1 // pred_fallthru
      _
    %155 = vsyncpa [#allocation3], 1
    %156 = vsyncpa [#allocation6], 1
    %157 = vsyncpa [#allocation4], 1

</llo_original>
